<compile_context>
chip_gen: v6e
topology: v6e:2x2x1
jax: 0.10.0
libtpu: 0.0.40
codegen_flags: <defaults>
</compile_context>

<pallas_src>
import functools
from typing import NamedTuple, Optional

import jax
import jax.numpy as jnp
from jax import lax
from jax.experimental import pallas as pl
from jax.experimental.pallas import tpu as pltpu


class AutoencoderOutput(NamedTuple):
    reconstruction: jnp.ndarray
    latent: jnp.ndarray
    parameters: Optional[dict] = None


# ----------------------------------------------------------------------------
# Pallas kernel: batched fused matmul + (folded BN) shift + activation epilogue
# ----------------------------------------------------------------------------

def _fused_matmul_kernel(x_ref, w_ref, shift_ref, o_ref, *, act):
    # blocks: x (1, tm, Kp) bf16, w (1, Kp, tn) bf16, shift (1, 1, tn) f32, o (1, tm, tn)
    y = jnp.dot(x_ref[0], w_ref[0], preferred_element_type=jnp.float32)
    y = y + shift_ref[0]
    if act == "relu":
        y = jnp.maximum(y, 0.0)
    elif act == "sigmoid":
        y = jax.nn.sigmoid(y)
    o_ref[0] = y.astype(o_ref.dtype)


def _round_up(x, m):
    return (x + m - 1) // m * m


def fused_matmul(x, w, shift, act="none", out_dtype=jnp.bfloat16):
    """y[b] = act(x[b] @ w[b] + shift).  x:(B,M,K), w:(B,K,N), shift:(N,).

    bf16 operands, f32 accumulate.  Whole-K per grid step; grid = (B, M-blk, N-blk),
    all parallel.  Inputs are zero-padded to MXU/lane friendly sizes and the result
    is sliced back to (B, M, N).
    """
    B, M, K = x.shape
    _, _, N = w.shape
    Kp = _round_up(K, 128)
    Np = _round_up(N, 128)
    # 256-wide RHS tiles fill the 256-column MXU on v6e/v7x; 128 when N is small.
    tn = 256 if Np % 256 == 0 else 128
    # tm multiple of 16 so bf16 (16,128) vregs are fully packed.
    tm = min(_round_up(M, 16), 256)
    Mp = _round_up(M, tm)
    # Guarantee >=2 parallel grid blocks so both v7x TensorCores get work.
    if B * (Mp // tm) * (Np // tn) < 2:
        if tm >= 32:
            tm //= 2
        elif tn > 128:
            tn //= 2

    x = x.astype(jnp.bfloat16)
    w = w.astype(jnp.bfloat16)
    if (Mp, Kp) != (M, K):
        x = jnp.pad(x, ((0, 0), (0, Mp - M), (0, Kp - K)))
    if (Kp, Np) != (K, N):
        w = jnp.pad(w, ((0, 0), (0, Kp - K), (0, Np - N)))
    shift = jnp.pad(shift.astype(jnp.float32), (0, Np - N)).reshape(1, 1, Np)

    out_itemsize = jnp.dtype(out_dtype).itemsize
    cost = pl.CostEstimate(
        flops=2 * B * M * K * N,
        transcendentals=(B * M * N) if act == "sigmoid" else 0,
        bytes_accessed=2 * B * M * K + 2 * B * K * N + 4 * N + out_itemsize * B * M * N,
    )

    grid = (B, Mp // tm, Np // tn)
    out = pl.pallas_call(
        functools.partial(_fused_matmul_kernel, act=act),
        out_shape=jax.ShapeDtypeStruct((B, Mp, Np), out_dtype),
        grid=grid,
        in_specs=[
            pl.BlockSpec((1, tm, Kp), lambda b, i, j: (b, i, 0)),
            pl.BlockSpec((1, Kp, tn), lambda b, i, j: (b, 0, j)),
            pl.BlockSpec((1, 1, tn), lambda b, i, j: (0, 0, j)),
        ],
        out_specs=pl.BlockSpec((1, tm, tn), lambda b, i, j: (b, i, j)),
        compiler_params=pltpu.CompilerParams(
            dimension_semantics=("parallel", "parallel", "parallel"),
            vmem_limit_bytes=32 * 1024 * 1024),
        cost_estimate=cost,
    )(x, w, shift)
    if (Mp, Np) != (M, N):
        out = out[:, :M, :N]
    return out


# ----------------------------------------------------------------------------
# Layer wrappers (thin JAX glue around the Pallas matmul), NHWC activations
# ----------------------------------------------------------------------------

def _bn_fold(bn, bias, cout):
    """Fold eval-mode BN + conv bias: y = conv_out * scale + shift."""
    if bn is None:
        return jnp.ones((cout,), jnp.float32), bias.astype(jnp.float32)
    gamma, beta, mean, var, eps = bn
    scale = gamma / jnp.sqrt(var + eps)
    shift = beta + (bias - mean) * scale
    return scale, shift


def _phase_to_dense(p):
    """(2,2,N,H,W,C) phase-major -> dense (N,2H,2W,C): dense[n,2i+r,2j+c] = p[r,c,n,i,j]."""
    _, _, n, h, w, c = p.shape
    return p.transpose(2, 3, 0, 4, 1, 5).reshape(n, 2 * h, 2 * w, c)


def _to_dense(x):
    """Accept either dense NHWC (4-D) or phase-major (6-D) activations."""
    return _phase_to_dense(x) if x.ndim == 6 else x


def conv_bn_act(x, w, bias, bn, act="relu", out_dtype=jnp.bfloat16):
    """Conv2d(k=4,s=2,p=1) + folded BN + activation.  x: NHWC, w: (Cout,Cin,4,4)."""
    x = x.astype(jnp.bfloat16)                       # cast before any concat/pad glue
    N, H, W_, C = x.shape
    cout = w.shape[0]
    Ho, Wo = (H + 2 - 4) // 2 + 1, (W_ + 2 - 4) // 2 + 1
    xp = jnp.pad(x, ((0, 0), (1, 1), (1, 1), (0, 0)))
    # im2col in (kh, kw, cin) feature order; channel-last concat is lane friendly.
    cols = [xp[:, kh:kh + 2 * Ho:2, kw:kw + 2 * Wo:2, :]
            for kh in range(4) for kw in range(4)]
    patches = jnp.concatenate(cols, axis=-1).reshape(N * Ho * Wo, 16 * C)
    scale, shift = _bn_fold(bn, bias, cout)
    wmat = w.transpose(2, 3, 1, 0).reshape(16 * C, cout) * scale[None, :]
    y = fused_matmul(patches[None], wmat[None], shift, act=act, out_dtype=out_dtype)
    return y[0].reshape(N, Ho, Wo, cout)


def deconv_bn_act(x, w, bias, bn, act="relu", out_dtype=jnp.bfloat16):
    """ConvTranspose2d(k=4,s=2,p=1) + folded BN + activation via sub-pixel phases.

    Output pixel (2i+r, 2j+c) only sees 2x2 of the 4x4 kernel taps, so the deconv is
    4 independent stride-1 2x2 convolutions (one per output phase) — no zero-dilated
    input.  The 4 phases run as one batched Pallas matmul and the result is returned
    PHASE-MAJOR (2,2,N,H,W,Cout); the next deconv consumes it directly (the interleave
    is absorbed into its window slicing), so no per-layer de-interleave transpose.
    x: dense NHWC or phase-major 6-D; w: (Cin,Cout,4,4).
    """
    x = _to_dense(x).astype(jnp.bfloat16)
    N, H, W_, C = x.shape
    cout = w.shape[1]
    xp = jnp.pad(x, ((0, 0), (1, 1), (1, 1), (0, 0)))
    scale, shift = _bn_fold(bn, bias, cout)
    w = w.astype(jnp.float32) * scale[None, :, None, None]   # fold BN scale into weights

    patch_list, wmat_list = [], []
    for r in (0, 1):
        for c in (0, 1):
            cols = [xp[:, r + dh:r + dh + H, c + dw:c + dw + W_, :]
                    for dh in (0, 1) for dw in (0, 1)]
            patch_list.append(
                jnp.concatenate(cols, axis=-1).reshape(N * H * W_, 4 * C))
            # taps[ic, oc, dh, dw] = W[ic, oc, 3-2dh-r, 3-2dw-c]
            taps = w[:, :, 3 - r::-2, 3 - c::-2]
            wmat_list.append(taps.transpose(2, 3, 0, 1).reshape(4 * C, cout))

    patches = jnp.stack(patch_list, axis=0)     # (4, N*H*W, 4C)
    wstack = jnp.stack(wmat_list, axis=0)       # (4, 4C, Cout) — same bytes as full W
    y = fused_matmul(patches, wstack, shift, act=act, out_dtype=out_dtype)
    # phase-major output: P[r, c, n, i, j, :] = out[n, 2i+r, 2j+c, :]
    return y.reshape(2, 2, N, H, W_, cout)


def bilinear_upsample_align_corners(x, out_h, out_w):
    """nn.Upsample(mode='bilinear', align_corners=True) on NHWC; identity if sizes match."""
    N, H, W_, C = x.shape
    if (H, W_) == (out_h, out_w):
        return x

    def interp_matrix(out_n, in_n):
        pos = jnp.arange(out_n, dtype=jnp.float32) * (in_n - 1) / max(out_n - 1, 1)
        lo = jnp.floor(pos).astype(jnp.int32)
        hi = jnp.minimum(lo + 1, in_n - 1)
        frac = pos - lo.astype(jnp.float32)
        m = jnp.zeros((out_n, in_n), jnp.float32)
        m = m.at[jnp.arange(out_n), lo].add(1.0 - frac)
        m = m.at[jnp.arange(out_n), hi].add(frac)
        return m

    mh = interp_matrix(out_h, H)
    mw = interp_matrix(out_w, W_)
    return jnp.einsum('oh,nhwc,pw->nopc', mh, x.astype(jnp.float32), mw)


# ----------------------------------------------------------------------------
# Parameters (deterministic init; shapes from BaseAutoencoder.__init__)
# ----------------------------------------------------------------------------

class _KeyGen:
    def __init__(self, key):
        self.key = key

    def __call__(self):
        self.key, sub = jax.random.split(self.key)
        return sub


def init_params(key):
    kg = _KeyGen(key)
    eps = 1e-5

    def bn_params(c):
        gamma = jax.random.uniform(kg(), (c,), jnp.float32, 0.5, 1.5)
        beta = jax.random.normal(kg(), (c,), jnp.float32) * 0.1
        mean = jax.random.normal(kg(), (c,), jnp.float32) * 0.1
        var = jax.random.uniform(kg(), (c,), jnp.float32, 0.5, 1.5)
        return (gamma, beta, mean, var, eps)

    params = {"enc": [], "dec": [], "final": None}
    for cin, cout in [(3, 64), (64, 128), (128, 256), (256, 512)]:
        w = jax.random.normal(kg(), (cout, cin, 4, 4), jnp.float32) / (cin * 16) ** 0.5
        b = jax.random.normal(kg(), (cout,), jnp.float32) * 0.01
        params["enc"].append((w, b, bn_params(cout)))
    for cin, cout in [(512, 256), (256, 128), (128, 64)]:
        # ConvTranspose2d weight layout: (Cin, Cout, kh, kw)
        w = jax.random.normal(kg(), (cin, cout, 4, 4), jnp.float32) / (cin * 16) ** 0.5
        b = jax.random.normal(kg(), (cout,), jnp.float32) * 0.01
        params["dec"].append((w, b, bn_params(cout)))
    wf = jax.random.normal(kg(), (64, 3, 4, 4), jnp.float32) / (64 * 16) ** 0.5
    bf = jax.random.normal(kg(), (3,), jnp.float32) * 0.01
    params["final"] = (wf, bf)
    return params


# ----------------------------------------------------------------------------
# Forward pass
# ----------------------------------------------------------------------------

def autoencoder_forward(x_nchw, params):
    N, _, H, W_ = x_nchw.shape
    h = x_nchw.transpose(0, 2, 3, 1).astype(jnp.bfloat16)   # NCHW -> NHWC once, bf16
    for (w, b, bn) in params["enc"]:
        h = conv_bn_act(h, w, b, bn, act="relu", out_dtype=jnp.bfloat16)
    latent = h.transpose(0, 3, 1, 2).reshape(N, -1).astype(jnp.float32)

    # Decoder: activations stay phase-major between deconv layers.
    for (w, b, bn) in params["dec"]:
        h = deconv_bn_act(h, w, b, bn, act="relu", out_dtype=jnp.bfloat16)
    wf, bf = params["final"]
    cur_h, cur_w = 2 * h.shape[3], 2 * h.shape[4]            # dense spatial before final layer
    if (2 * cur_h, 2 * cur_w) == (H, W_):
        # Upsample is the identity -> fuse Sigmoid into the final matmul epilogue.
        h = deconv_bn_act(h, wf, bf, None, act="sigmoid", out_dtype=jnp.float32)
        h = _phase_to_dense(h)                               # single interleave at the end
    else:
        # TODO(synk): rare path (input not divisible by 16); bilinear resample +
        # sigmoid done in plain JAX instead of a dedicated Pallas kernel.
        h = deconv_bn_act(h, wf, bf, None, act="none", out_dtype=jnp.float32)
        h = jax.nn.sigmoid(bilinear_upsample_align_corners(_phase_to_dense(h), H, W_))
    recon = h.transpose(0, 3, 1, 2)                          # back to NCHW
    return AutoencoderOutput(reconstruction=recon, latent=latent)


# TODO(synk): optimizer / LR scheduler / training_step / abstract _compute_loss are
# training-host logic with no Pallas equivalent; BatchNorm is applied in eval mode
# (running stats folded into the matmul), not train-mode batch statistics.


# ----------------------------------------------------------------------------
# Reference ops (lightweight numerical self-check of the building blocks)
# ----------------------------------------------------------------------------

def _ref_conv(x_nhwc, w, b):
    return lax.conv_general_dilated(
        x_nhwc, w.transpose(2, 3, 1, 0), window_strides=(2, 2),
        padding=((1, 1), (1, 1)), dimension_numbers=('NHWC', 'HWIO', 'NHWC')) + b


def _ref_deconv(x_nhwc, w, b):
    w_eq = jnp.flip(w, (2, 3)).transpose(2, 3, 0, 1)      # HWIO, I=Cin, O=Cout
    return lax.conv_general_dilated(
        x_nhwc, w_eq, window_strides=(1, 1), padding=((2, 2), (2, 2)),
        lhs_dilation=(2, 2), dimension_numbers=('NHWC', 'HWIO', 'NHWC')) + b


if __name__ == "__main__":
    key = jax.random.PRNGKey(0)
    kparams, kx, k1, k2, k3, k4 = jax.random.split(key, 6)

    # --- small numerical self-check of the conv / sub-pixel deconv lowering ---
    bf = lambda a: a.astype(jnp.bfloat16).astype(jnp.float32)
    xt = bf(jax.random.uniform(k1, (2, 8, 8, 8), jnp.float32))
    wc = bf(jax.random.normal(k2, (16, 8, 4, 4), jnp.float32) * 0.1)
    wd = bf(jax.random.normal(k3, (8, 16, 4, 4), jnp.float32) * 0.1)
    bt = bf(jax.random.normal(k4, (16,), jnp.float32) * 0.1)
    got_c = conv_bn_act(xt, wc, bt, None, act="none", out_dtype=jnp.float32)
    got_d = _phase_to_dense(
        deconv_bn_act(xt, wd, bt, None, act="none", out_dtype=jnp.float32))
    assert jnp.allclose(got_c, _ref_conv(xt, wc, bt), atol=1e-2, rtol=1e-2)
    assert jnp.allclose(got_d, _ref_deconv(xt, wd, bt), atol=1e-2, rtol=1e-2)

    # --- full forward pass ---
    params = init_params(kparams)
    # input_size = (32, 32): smallest clean size for n_downsample=4 -> final 2x2.
    x = jax.random.uniform(kx, (2, 3, 32, 32), dtype=jnp.float32)

    fwd = jax.jit(lambda xx: autoencoder_forward(xx, params))
    out = fwd(x)
    jax.block_until_ready(out)

    assert out.reconstruction.shape == (2, 3, 32, 32)
    assert out.reconstruction.dtype == jnp.float32
    assert out.latent.shape == (2, 512 * 2 * 2)           # flat_dim = 512 * 2 * 2
    assert bool(jnp.all(jnp.isfinite(out.reconstruction)))
    assert bool(jnp.all((out.reconstruction >= 0) & (out.reconstruction <= 1)))
    print("KERNEL_OK")
</pallas_src>

<mosaic_0001>
module attributes {stable_mosaic.version = 11 : i64} {
  func.func @_fused_matmul_kernel(%arg0: i32, %arg1: i32, %arg2: i32, %arg3: memref<1x16x128xbf16, #tpu.memory_space<vmem>>, %arg4: memref<1x128x128xbf16, #tpu.memory_space<vmem>>, %arg5: memref<1x1x128xf32, #tpu.memory_space<vmem>>, %arg6: memref<1x16x128xf32, #tpu.memory_space<vmem>>) attributes {dimension_semantics = [#tpu.dimension_semantics<parallel>, #tpu.dimension_semantics<parallel>, #tpu.dimension_semantics<parallel>], iteration_bounds = array<i64: 1, 2, 1>, scalar_prefetch = 0 : i64, scratch_operands = 0 : i64, tpu.core_type = #tpu.core_type<tc>, window_params = [{transform_indices = @transform_0, window_bounds = array<i64: 1, 16, 128>}, {transform_indices = @transform_1, window_bounds = array<i64: 1, 128, 128>}, {transform_indices = @transform_2, window_bounds = array<i64: 1, 1, 128>}, {transform_indices = @transform_3, window_bounds = array<i64: 1, 16, 128>}]} {
    %c0 = arith.constant 0 : index
    %c0_0 = arith.constant 0 : index
    %c0_1 = arith.constant 0 : index
    %0 = vector.load %arg3[%c0, %c0_0, %c0_1] : memref<1x16x128xbf16, #tpu.memory_space<vmem>>, vector<1x16x128xbf16>
    %1 = vector.shape_cast %0 : vector<1x16x128xbf16> to vector<16x128xbf16>
    %c0_2 = arith.constant 0 : index
    %c0_3 = arith.constant 0 : index
    %c0_4 = arith.constant 0 : index
    %2 = vector.load %arg4[%c0_2, %c0_3, %c0_4] : memref<1x128x128xbf16, #tpu.memory_space<vmem>>, vector<1x128x128xbf16>
    %3 = vector.shape_cast %2 : vector<1x128x128xbf16> to vector<128x128xbf16>
    %cst = arith.constant dense<0.000000e+00> : vector<16x128xf32>
    %4 = tpu.matmul %1, %3, %cst {dimension_numbers = #tpu.dot_dimension_numbers<[1], [0], [0], [1], [0, 0, 1, 1], [], []>} : vector<16x128xbf16>, vector<128x128xbf16>, vector<16x128xf32> -> vector<16x128xf32>
    %c0_5 = arith.constant 0 : index
    %c0_6 = arith.constant 0 : index
    %c0_7 = arith.constant 0 : index
    %5 = vector.load %arg5[%c0_5, %c0_6, %c0_7] : memref<1x1x128xf32, #tpu.memory_space<vmem>>, vector<1x1x128xf32>
    %6 = vector.shape_cast %5 : vector<1x1x128xf32> to vector<1x128xf32>
    %7 = vector.broadcast %6 : vector<1x128xf32> to vector<16x128xf32>
    %8 = arith.addf %4, %7 : vector<16x128xf32>
    %c0_8 = arith.constant 0 : index
    %c0_9 = arith.constant 0 : index
    %c0_10 = arith.constant 0 : index
    %9 = vector.load %arg6[%c0_8, %c0_9, %c0_10] : memref<1x16x128xf32, #tpu.memory_space<vmem>>, vector<1x16x128xf32>
    %10 = vector.shape_cast %9 : vector<1x16x128xf32> to vector<16x128xf32>
    %11 = vector.shape_cast %8 : vector<16x128xf32> to vector<1x16x128xf32>
    tpu.vector_store %arg6[%c0_8, %c0_9, %c0_10], %11 {strides = array<i32>} : memref<1x16x128xf32, #tpu.memory_space<vmem>>, vector<1x16x128xf32>,
    return
  }
  func.func @transform_0(%arg0: i32, %arg1: i32, %arg2: i32) -> (i32, i32, i32) {
    %c0_i32 = arith.constant 0 : i32
    %c0_i32_0 = arith.constant 0 : i32
    return %arg0, %arg1, %c0_i32 : i32, i32, i32
  }
  func.func @transform_1(%arg0: i32, %arg1: i32, %arg2: i32) -> (i32, i32, i32) {
    %c0_i32 = arith.constant 0 : i32
    %c0_i32_0 = arith.constant 0 : i32
    return %arg0, %c0_i32, %arg2 : i32, i32, i32
  }
  func.func @transform_2(%arg0: i32, %arg1: i32, %arg2: i32) -> (i32, i32, i32) {
    %c0_i32 = arith.constant 0 : i32
    %c0_i32_0 = arith.constant 0 : i32
    %c0_i32_1 = arith.constant 0 : i32
    return %c0_i32, %c0_i32_0, %arg2 : i32, i32, i32
  }
  func.func @transform_3(%arg0: i32, %arg1: i32, %arg2: i32) -> (i32, i32, i32) {
    %c0_i32 = arith.constant 0 : i32
    return %arg0, %arg1, %arg2 : i32, i32, i32
  }
}

</mosaic_0001>

<llo_original>
// kernel: tpu_custom_call.1
$region0: #{tpu_custom_call.1}
  #allocation0 [shape = 'u32[]', space=smem, size = 0x4, offset = 0x4, fixed_abs, tag = 'smem constant byte address 0x4 - core index']
  #allocation1 [shape = 'u32[144,128]{1,0:T(1,128)}', space=vmem, size = 0x12000, scoped, tag = 'internal scratch']
  %s0 = inlined_call_operand.hbm [shape: bf16[1,32,128], index: 0, kind: input, shape index: {}]
  %s1 = inlined_call_operand.hbm [shape: bf16[1,128,128], index: 1, kind: input, shape index: {}]
  %s2 = inlined_call_operand.vmem [shape: f32[1,1,128], index: 2, kind: input, shape index: {}]
  %s3 = inlined_call_operand.hbm [shape: f32[1,32,128], index: 3, kind: output, shape index: {}]
  %s4 = sld [smem:[#allocation0]]
  $region53: #{tpu_custom_call.1} parent=0
    _
  %s6 = ssub.s32 1, %s4
  %s7 = scalar_select 0, %s6, %s4
  $region1: #{tpu_custom_call.1} parent=0
    #allocation2 [shape = 'u8[8192]{0}', space=vmem, size = 0x2000, scoped, tag = 'input window, operand 0']
    #allocation3 [shape = 's32[2]{0}', space=sflag, size = 0x8, scoped, tag = 'scoped memory for tpu_custom_call.1']
    #allocation4 [shape = 's32[2]{0}', space=sflag, size = 0x8, scoped, tag = 'scoped memory for tpu_custom_call.1']
    #allocation5 [shape = 'u8[32768]{0}', space=vmem, size = 0x8000, scoped, tag = 'input window, operand 1, single buffered']
    #allocation6 [shape = 's32[1]{0}', space=sflag, size = 0x4, scoped, tag = 'scoped memory for tpu_custom_call.1']
    #allocation7 [shape = 'u8[16384]{0}', space=vmem, size = 0x4000, scoped, tag = 'output window, operand 0']
    %8 = vsyncpa [#allocation3], 0
    %s9 = scalar_lea.sflag [#allocation3], 1
    %10 = vsyncpa %s9, 0
    %11 = vsyncpa [#allocation6], 0
    %12 = vsyncpa [#allocation4], 0
    %s13 = scalar_lea.sflag [#allocation4], 1
    %14 = vsyncpa %s13, 0
    loop: start=0, step=1, limit=4
    $region2: #{tpu_custom_call.1} parent=1 // loop_pre_header
      _
    $region3: #{tpu_custom_call.1} parent=1 // loop_header
      %s16 = sphi 0, %s20
      %p17 = scmp.ge.s32.totalorder %s16, 4
      %s23 = sphi 0, %s42
      %s24 = sphi 0, %s38
      %s25 = sphi 0, %s34
      %s26 = sphi 0, %s23
      %s27 = sphi 0, %s24
      %s28 = sphi 0, %s25
      %s29 = sphi 0, %s26
      %s30 = sphi 0, %s27
      %s31 = sphi 0, %s28
      %s47 = sphi 0, %s49
      %s50 = sphi 0, %s47
      %s51 = sphi 0, %s50
      %s67 = sphi 0, %s51
      %s75 = sphi 0, %s77
      %s78 = sphi 0, %s75
      %s79 = sphi 0, %s78
      %s95 = sphi 0, %s79
      %s101 = sphi 0, %s103
      %s104 = sphi 0, %s101
      %s105 = sphi 0, %s104
      %s121 = sphi 0, %s105
      %s131 = sphi 0, %s133
      %s134 = sphi 0, %s131
      %s135 = sphi 0, %s134
      %s151 = sphi 0, %s135
    $region4: #{tpu_custom_call.1} parent=1 // loop_header_branch
      %19 = sbr.rel (%p17) target = $region8
    $region5: #{tpu_custom_call.1} parent=1 // loop_body
      %s21 = ssub.s32 %s16, 1
      %s22 = ssub.s32 %s16, 2
      %s32 = sadd.s32 1, %s25
      %p33 = scmp.ge.s32.totalorder %s32, 1
      %s34 = scalar_select %p33, 0, %s32
      %s35 = sadd.s32 1, %s24
      %s36 = scalar_select %p33, %s35, %s24
      %p37 = scmp.ge.s32.totalorder %s36, 2
      %s38 = scalar_select %p37, 0, %s36
      %s39 = sadd.s32 1, %s23
      %s40 = scalar_select %p37, %s39, %s23
      %p41 = scmp.ge.s32.totalorder %s40, 1
      %s42 = scalar_select %p41, 0, %s40
      %s43 = ssub.s32 %s23, %s42
      %s44 = ssub.s32 %s24, %s38
      %s45 = sor.u32 %s43, %s44
      %p46 = scmp.eq.s32.totalorder %s45, 0
      %s48 = sadd.s32 %s47, 1
      %s49 = scalar_select %p46, %s47, %s48
      %p52 = pneg %p46
      %p53 = scmp.eq.s32.totalorder %s16, 1
      %p54 = por %p52, %p53
      %p55 = scmp.ne.s32.totalorder %s47, %s50
      %p56 = scmp.eq.s32.totalorder %s16, 0
      %p57 = por %p55, %p56
      %p58 = scmp.ne.s32.totalorder %s47, %s50
      %p59 = scmp.eq.s32.totalorder %s21, 1
      %p60 = por %p58, %p59
      %p61 = scmp.ne.s32.totalorder %s50, %s51
      %p62 = scmp.eq.s32.totalorder %s21, 0
      %p63 = por %p61, %p62
      %p64 = scmp.ne.s32.totalorder %s50, %s51
      %p65 = scmp.eq.s32.totalorder %s22, 1
      %p66 = por %p64, %p65
      %p68 = scmp.ne.s32.totalorder %s51, %s67
      %p69 = scmp.eq.s32.totalorder %s22, 0
      %p70 = por %p68, %p69
      %s71 = ssub.s32 %s23, %s42
      %s72 = ssub.s32 %s25, %s34
      %s73 = sor.u32 %s71, %s72
      %p74 = scmp.eq.s32.totalorder %s73, 0
      %s76 = sadd.s32 %s75, 1
      %s77 = scalar_select %p74, %s75, %s76
      %p80 = pneg %p74
      %p81 = scmp.eq.s32.totalorder %s16, 1
      %p82 = por %p80, %p81
      %p83 = scmp.ne.s32.totalorder %s75, %s78
      %p84 = scmp.eq.s32.totalorder %s16, 0
      %p85 = por %p83, %p84
      %p86 = scmp.ne.s32.totalorder %s75, %s78
      %p87 = scmp.eq.s32.totalorder %s21, 1
      %p88 = por %p86, %p87
      %p89 = scmp.ne.s32.totalorder %s78, %s79
      %p90 = scmp.eq.s32.totalorder %s21, 0
      %p91 = por %p89, %p90
      %p92 = scmp.ne.s32.totalorder %s78, %s79
      %p93 = scmp.eq.s32.totalorder %s22, 1
      %p94 = por %p92, %p93
      %p96 = scmp.ne.s32.totalorder %s79, %s95
      %p97 = scmp.eq.s32.totalorder %s22, 0
      %p98 = por %p96, %p97
      %s99 = ssub.s32 %s25, %s34
      %p100 = scmp.eq.s32.totalorder %s99, 0
      %s102 = sadd.s32 %s101, 1
      %s103 = scalar_select %p100, %s101, %s102
      %p106 = pneg %p100
      %p107 = scmp.eq.s32.totalorder %s16, 1
      %p108 = por %p106, %p107
      %p109 = scmp.ne.s32.totalorder %s101, %s104
      %p110 = scmp.eq.s32.totalorder %s16, 0
      %p111 = por %p109, %p110
      %p112 = scmp.ne.s32.totalorder %s101, %s104
      %p113 = scmp.eq.s32.totalorder %s21, 1
      %p114 = por %p112, %p113
      %p115 = scmp.ne.s32.totalorder %s104, %s105
      %p116 = scmp.eq.s32.totalorder %s21, 0
      %p117 = por %p115, %p116
      %p118 = scmp.ne.s32.totalorder %s104, %s105
      %p119 = scmp.eq.s32.totalorder %s22, 1
      %p120 = por %p118, %p119
      %p122 = scmp.ne.s32.totalorder %s105, %s121
      %p123 = scmp.eq.s32.totalorder %s22, 0
      %p124 = por %p122, %p123
      %s125 = ssub.s32 %s23, %s42
      %s126 = ssub.s32 %s24, %s38
      %s127 = sor.u32 %s125, %s126
      %s128 = ssub.s32 %s25, %s34
      %s129 = sor.u32 %s127, %s128
      %p130 = scmp.eq.s32.totalorder %s129, 0
      %s132 = sadd.s32 %s131, 1
      %s133 = scalar_select %p130, %s131, %s132
      %p136 = pneg %p130
      %p137 = scmp.eq.s32.totalorder %s16, 1
      %p138 = por %p136, %p137
      %p139 = scmp.ne.s32.totalorder %s131, %s134
      %p140 = scmp.eq.s32.totalorder %s16, 0
      %p141 = por %p139, %p140
      %p142 = scmp.ne.s32.totalorder %s131, %s134
      %p143 = scmp.eq.s32.totalorder %s21, 1
      %p144 = por %p142, %p143
      %p145 = scmp.ne.s32.totalorder %s134, %s135
      %p146 = scmp.eq.s32.totalorder %s21, 0
      %p147 = por %p145, %p146
      %p148 = scmp.ne.s32.totalorder %s134, %s135
      %p149 = scmp.eq.s32.totalorder %s22, 1
      %p150 = por %p148, %p149
      %p152 = scmp.ne.s32.totalorder %s135, %s151
      %p153 = scmp.eq.s32.totalorder %s22, 0
      %p154 = por %p152, %p153
      %p155 = scmp.le.s32.totalorder 1, %s16
      %p156 = scmp.lt.s32.totalorder %s16, 3
      %p157 = pnand %p155, %p156
      %p158 = pneg %p157
      // Predicated region
      $region9: #{tpu_custom_call.1} parent=5 // pred_check
        _
      $region10: #{tpu_custom_call.1} parent=5 // pred_check_branch
        %160 = sbr.rel (%p157) target = $region12
      $region11: #{tpu_custom_call.1} parent=5 // pred_region
        %s161 = ssub.s32 %s16, 1
        // Predicated region
        $region13: #{tpu_custom_call.1} parent=11 // pred_check
          %p162 = pneg %p91
        $region14: #{tpu_custom_call.1} parent=11 // pred_check_branch
          %164 = sbr.rel (%p162) target = $region16
        $region15: #{tpu_custom_call.1} parent=11 // pred_region
          %s166 = ssub.s32 1024, 1024
          %167 = vsyncadd [#allocation6], %s166
          %s168 = smul.addr %s26, 16
          %s169 = sadd.s32 %s28, %s168
          %s170 = smul.addr %s169, 64
          %s171 = scalar_lea.hbm %s1, %s170
          %s172 = sshll.u32 [#allocation5], 4
          %s173 = int_to_ptr.vmem [resolvable:$true] %s172
          %178 = dma.hbm_to_vmem [thread:$0]  %s171, 1024, %s173, [#allocation6], 64, 64, 4
        $region16: #{tpu_custom_call.1} parent=11 // pred_fallthru
          _
        // Predicated region
        $region17: #{tpu_custom_call.1} parent=11 // pred_check
          %p179 = pneg %p117
        $region18: #{tpu_custom_call.1} parent=11 // pred_check_branch
          %181 = sbr.rel (%p179) target = $region20
        $region19: #{tpu_custom_call.1} parent=11 // pred_region
          %p182 = scmp.lt.s32.totalorder %s28, 0
          %s183 = scalar_select %p182, %s28, 0
          %s184 = scalar_lea.vmem %s2, %s183
        $region20: #{tpu_custom_call.1} parent=11 // pred_fallthru
          _
      $region12: #{tpu_custom_call.1} parent=5 // pred_fallthru
        _
      %p185 = scmp.lt.s32.totalorder %s16, 2
      // Predicated region
      $region21: #{tpu_custom_call.1} parent=5 // pred_check
        %p186 = pneg %p185
      $region22: #{tpu_custom_call.1} parent=5 // pred_check_branch
        %188 = sbr.rel (%p186) target = $region24
      $region23: #{tpu_custom_call.1} parent=5 // pred_region
        // Predicated region
        $region25: #{tpu_custom_call.1} parent=23 // pred_check
          %p189 = pneg %p57
        $region26: #{tpu_custom_call.1} parent=23 // pred_check_branch
          %191 = sbr.rel (%p189) target = $region28
        $region27: #{tpu_custom_call.1} parent=23 // pred_region
          %s192 = sand.u32 %s47, 1
          %s193 = scalar_lea.sflag [#allocation3], %s192
          %s194 = sand.u32 %s47, 1
          %s195 = smul.addr %s194, 8
          %s196 = scalar_lea.vmem [#allocation2], %s195
          %s197 = smul.u32 2, %s24
          %s199 = ssub.s32 128, 128
          %200 = vsyncadd %s193, %s199
          %s201 = smul.addr %s23, 4
          %s202 = sadd.s32 %s197, %s201
          %s203 = smul.addr %s202, 64
          %s204 = scalar_lea.hbm %s0, %s203
          %s205 = sshll.u32 %s196, 4
          %s206 = int_to_ptr.vmem [resolvable:$true] %s205
          %211 = dma.hbm_to_vmem [thread:$0]  %s204, 128, %s206, %s193, 64, 64, 4
        $region28: #{tpu_custom_call.1} parent=23 // pred_fallthru
          _
      $region24: #{tpu_custom_call.1} parent=5 // pred_fallthru
        _
      %p212 = scmp.le.s32.totalorder 1, %s16
      %p213 = scmp.lt.s32.totalorder %s16, 3
      %p214 = pnand %p212, %p213
      %p215 = pneg %p214
      // Predicated region
      $region29: #{tpu_custom_call.1} parent=5 // pred_check
        _
      $region30: #{tpu_custom_call.1} parent=5 // pred_check_branch
        %217 = sbr.rel (%p214) target = $region32
      $region31: #{tpu_custom_call.1} parent=5 // pred_region
        %s218 = ssub.s32 %s16, 1
        %s219 = sand.u32 %s50, 1
        %s220 = scalar_lea.sflag [#allocation3], %s219
        %s221 = sand.u32 %s50, 1
        %s222 = smul.addr %s221, 8
        %s223 = scalar_lea.vmem [#allocation2], %s222
        // Predicated region
        $region33: #{tpu_custom_call.1} parent=31 // pred_check
          %p224 = pneg %p63
        $region34: #{tpu_custom_call.1} parent=31 // pred_check_branch
          %226 = sbr.rel (%p224) target = $region36
        $region35: #{tpu_custom_call.1} parent=31 // pred_region
          %227 = dma.done %s220, 128
        $region36: #{tpu_custom_call.1} parent=31 // pred_fallthru
          _
        // Predicated region
        $region37: #{tpu_custom_call.1} parent=31 // pred_check
          %p228 = pneg %p91
        $region38: #{tpu_custom_call.1} parent=31 // pred_check_branch
          %230 = sbr.rel (%p228) target = $region40
        $region39: #{tpu_custom_call.1} parent=31 // pred_region
          %231 = dma.done [#allocation6], 1024
        $region40: #{tpu_custom_call.1} parent=31 // pred_fallthru
          _
        %s232 = sand.u32 %s50, 1
        %s233 = scalar_lea.sflag [#allocation3], %s232
        %s234 = sand.u32 %s50, 1
        %s235 = smul.addr %s234, 8
        %s236 = scalar_lea.vmem [#allocation2], %s235
        %p237 = pneg %p63
        %p238 = pneg %p60
        %p239 = pneg %p91
        %p240 = pneg %p88
        %p241 = scmp.lt.s32.totalorder %s28, 0
        %s242 = scalar_select %p241, %s28, 0
        %s243 = scalar_lea.vmem %s2, %s242
        %p244 = pneg %p117
        %p245 = pneg %p114
        %p246 = pneg %p147
        %p247 = pneg %p144
        %s248 = sand.u32 %s134, 1
        %s249 = scalar_lea.sflag [#allocation4], %s248
        %s250 = sand.u32 %s134, 1
        %s251 = smul.addr %s250, 16
        %s252 = scalar_lea.vmem [#allocation7], %s251
        %s253 = smul.u32 2, %s27
        %p254 = scmp.lt.s32.totalorder %s28, 0
        %s255 = scalar_select %p254, %s28, 0
        %s256 = scalar_lea.vmem %s2, %s255
        %s257 = smul.u32 2, %s27
        %v259 = vld [vmem:[%s223] sm:$0xf]
        %v260 = vld [vmem:[%s223 + $0x4] sm:$0xf]
        %v261 = vld [vmem:[#allocation5] sm:$0xf]
        %v262 = vld [vmem:[#allocation5 + $0x4] sm:$0xf]
        %v263 = vld [vmem:[#allocation5 + $0x8] sm:$0xf]
        %v264 = vld [vmem:[#allocation5 + $0xc] sm:$0xf]
        %v265 = vld [vmem:[#allocation5 + $0x10] sm:$0xf]
        %v266 = vld [vmem:[#allocation5 + $0x14] sm:$0xf]
        %v267 = vld [vmem:[#allocation5 + $0x18] sm:$0xf]
        %v268 = vld [vmem:[#allocation5 + $0x1c] sm:$0xf]
        %v269 = vld [vmem:[#allocation5 + $0x20] sm:$0xf]
        %v270 = vld [vmem:[#allocation5 + $0x24] sm:$0xf]
        %v271 = vld [vmem:[#allocation5 + $0x28] sm:$0xf]
        %v272 = vld [vmem:[#allocation5 + $0x2c] sm:$0xf]
        %v273 = vld [vmem:[#allocation5 + $0x30] sm:$0xf]
        %v274 = vld [vmem:[#allocation5 + $0x34] sm:$0xf]
        %v275 = vld [vmem:[#allocation5 + $0x38] sm:$0xf]
        %v276 = vld [vmem:[#allocation5 + $0x3c] sm:$0xf]
        %v277 = vld [vmem:[%s256] sm:$0x1]
        %v279 = vlaneseq
        %v280 = vshrl.u32 %v279, 7
        %v281 = vsub.s32 0, %v280
        %v282 = vrot.slane %v277, %v281
        %v286 = vunpack.c.l.b16 %v259
        %v287 = vunpack.c.l.b16 %v260
        %v288 = vpack.c.b16 %v287, %v286
        %v306 = vunpack.c.l.b16 %v261
        %v307 = vunpack.c.l.b16 %v262
        %v308 = vunpack.c.l.b16 %v263
        %v309 = vunpack.c.l.b16 %v264
        %v310 = vunpack.c.l.b16 %v265
        %v311 = vunpack.c.l.b16 %v266
        %v312 = vunpack.c.l.b16 %v267
        %v313 = vunpack.c.l.b16 %v268
        %v314 = vunpack.c.l.b16 %v269
        %v315 = vunpack.c.l.b16 %v270
        %v316 = vunpack.c.l.b16 %v271
        %v317 = vunpack.c.l.b16 %v272
        %v318 = vunpack.c.l.b16 %v273
        %v319 = vunpack.c.l.b16 %v274
        %v320 = vunpack.c.l.b16 %v275
        %v321 = vunpack.c.l.b16 %v276
        %v322 = vpack.c.b16 %v307, %v306
        %v323 = vpack.c.b16 %v309, %v308
        %v324 = vpack.c.b16 %v311, %v310
        %v325 = vpack.c.b16 %v313, %v312
        %v326 = vpack.c.b16 %v315, %v314
        %v327 = vpack.c.b16 %v317, %v316
        %v328 = vpack.c.b16 %v319, %v318
        %v329 = vpack.c.b16 %v321, %v320
        %338 = vmatprep.subr.bf16.mxu0 0
        %339 = vmatpush1.bf16.msra.mxu0 %v329
        %340 = vmatprep.subr.bf16.mxu0 0
        %341 = vmatpush1.bf16.msra.mxu0 %v328
        %342 = vmatprep.subr.bf16.mxu0 0
        %343 = vmatpush1.bf16.msra.mxu0 %v327
        %344 = vmatprep.subr.bf16.mxu0 0
        %345 = vmatpush1.bf16.msra.mxu0 %v326
        %346 = vmatprep.subr.bf16.mxu0 0
        %347 = vmatpush1.bf16.msra.mxu0 %v325
        %348 = vmatprep.subr.bf16.mxu0 0
        %349 = vmatpush1.bf16.msra.mxu0 %v324
        %350 = vmatprep.subr.bf16.mxu0 0
        %351 = vmatpush1.bf16.msra.mxu0 %v323
        %352 = vmatprep.subr.bf16.mxu0 0
        %353 = vmatpush1.bf16.msra.mxu0 %v322
        %354 = vmatprep.subr.bf16.mxu0 0
        %355 = vmatpush2.bf16.msra.mxu0 0
        %356 = vmatprep.subr.bf16.mxu0 0
        %357 = vmatpush2.bf16.msra.mxu0 0
        %358 = vmatprep.subr.bf16.mxu0 0
        %359 = vmatpush2.bf16.msra.mxu0 0
        %360 = vmatprep.subr.bf16.mxu0 0
        %361 = vmatpush2.bf16.msra.mxu0 0
        %362 = vmatprep.subr.bf16.mxu0 0
        %363 = vmatpush2.bf16.msra.mxu0 0
        %364 = vmatprep.subr.bf16.mxu0 0
        %365 = vmatpush2.bf16.msra.mxu0 0
        %366 = vmatprep.subr.bf16.mxu0 0
        %367 = vmatpush2.bf16.msra.mxu0 0
        %368 = vmatprep.subr.bf16.mxu0 0
        %369 = vmatpush2.bf16.msra.mxu0 0
        %370 = vmatprep.mubr.bf16.mxu0 0
        %371 = vmatmul.mubr.bf16.gmra.mxu0 %v288
        %v372 = vpop.f32.mrf.mxu0
        %v373 = vadd.f32 %v282, %v372
        %v374 = vpop.f32.mrf.mxu0
        %v375 = vpop.f32.mrf.mxu0
        %v376 = vadd.f32 %v282, %v375
        %v377 = vpop.f32.mrf.mxu0
        %378 = vdwg.mxu0
        %379 = vst [vmem:[%s252] sm:$0xff] %v373
        %380 = vst [vmem:[%s252 + $0x8] sm:$0xff] %v376
        %s381 = sand.u32 %s134, 1
        %s382 = scalar_lea.sflag [#allocation4], %s381
        %s383 = sand.u32 %s134, 1
        %s384 = smul.addr %s383, 16
        %s385 = scalar_lea.vmem [#allocation7], %s384
        // Predicated region
        $region41: #{tpu_custom_call.1} parent=31 // pred_check
          %p386 = pneg %p144
        $region42: #{tpu_custom_call.1} parent=31 // pred_check_branch
          %388 = sbr.rel (%p386) target = $region44
        $region43: #{tpu_custom_call.1} parent=31 // pred_region
          %s389 = smul.u32 2, %s27
          %s391 = ssub.s32 256, 256
          %392 = vsyncadd %s382, %s391
          %s393 = sadd.s32 %s28, %s389
          %s394 = smul.addr %s26, 4
          %s395 = sadd.s32 %s393, %s394
          %s396 = smul.addr %s395, 128
          %s397 = scalar_lea.hbm %s3, %s396
          %s398 = sshll.u32 %s385, 4
          %s399 = int_to_ptr.vmem [resolvable:$true] %s398
          %404 = dma.vmem_to_hbm [thread:$0]  %s399, 256, %s397, %s382, 128, 128, 8
        $region44: #{tpu_custom_call.1} parent=31 // pred_fallthru
          _
      $region32: #{tpu_custom_call.1} parent=5 // pred_fallthru
        _
      %p405 = scmp.le.s32.totalorder 2, %s16
      // Predicated region
      $region45: #{tpu_custom_call.1} parent=5 // pred_check
        %p406 = pneg %p405
      $region46: #{tpu_custom_call.1} parent=5 // pred_check_branch
        %408 = sbr.rel (%p406) target = $region48
      $region47: #{tpu_custom_call.1} parent=5 // pred_region
        %s409 = ssub.s32 %s16, 2
        // Predicated region
        $region49: #{tpu_custom_call.1} parent=47 // pred_check
          %p410 = pneg %p150
        $region50: #{tpu_custom_call.1} parent=47 // pred_check_branch
          %412 = sbr.rel (%p410) target = $region52
        $region51: #{tpu_custom_call.1} parent=47 // pred_region
          %s413 = sand.u32 %s135, 1
          %s414 = scalar_lea.sflag [#allocation4], %s413
          %s415 = sand.u32 %s135, 1
          %s416 = smul.addr %s415, 16
          %s417 = scalar_lea.vmem [#allocation7], %s416
          %418 = dma.done %s414, 256
        $region52: #{tpu_custom_call.1} parent=47 // pred_fallthru
          _
      $region48: #{tpu_custom_call.1} parent=5 // pred_fallthru
        _
    $region6: #{tpu_custom_call.1} parent=1 // loop_footer
      %s20 = sadd.s32 1, %s16
    $region7: #{tpu_custom_call.1} parent=1 // loop_footer_branch
      %15 = sbr.rel target = $region3
    $region8: #{tpu_custom_call.1} parent=1 // loop_exit
      _
    %419 = vsyncpa [#allocation3], 1
    %s420 = scalar_lea.sflag [#allocation3], 1
    %421 = vsyncpa %s420, 1
    %422 = vsyncpa [#allocation6], 1
    %423 = vsyncpa [#allocation4], 1
    %s424 = scalar_lea.sflag [#allocation4], 1
    %425 = vsyncpa %s424, 1

</llo_original>
